<compile_context>
chip_gen: v6e
topology: v6e:2x2x1
jax: 0.10.0
libtpu: 0.0.40
codegen_flags: <defaults>
</compile_context>

<pallas_src>
import jax
import jax.numpy as jnp
from jax.experimental import pallas as pl
from jax.experimental.pallas import tpu as pltpu

_RING = 16        # DMA semaphore ring slots (power of 2)
_LOOKAHEAD = 12   # DMA issue-ahead depth (< _RING so issue slot != wait slot)
_UNROLL = 4       # steady-state unroll of the HBM gather loop


def _make_hbm_gather_kernel(padding_idx):
    """Row gather table[ids] via a ring of async HBM->VMEM DMAs that land
    directly in the pipelined output tile (no scratch buffer)."""

    def kernel(ids_ref, table_hbm, out_ref, sem):
        tm, E = out_ref.shape
        V = table_hbm.shape[0]
        base = pl.program_id(0) * tm
        zero_row = jnp.zeros((1, E), out_ref.dtype)  # hoisted: no per-iter broadcast

        def start(row):
            # Issue the DMA for `row` iff it is a real (non-pad) token.
            tok = ids_ref[base + row]

            @pl.when(tok != padding_idx)
            def _():
                # In-kernel clamp: invalid ids map to a valid row (documented
                # deviation; nn.Embedding would raise).
                src_row = jnp.clip(tok, 0, V - 1)
                pltpu.make_async_copy(
                    table_hbm.at[pl.ds(src_row, 1), :],
                    out_ref.at[pl.ds(row, 1), :],
                    sem.at[row & (_RING - 1)],
                ).start()

        def finish(row, tok):
            # NOTE: predicate must be derived from the SAME SMEM value as the
            # matching start() so the semaphore ring stays balanced.
            @pl.when(tok != padding_idx)
            def _():
                # Wait descriptor: only shape/dtype + slot matter, but they
                # must stay in lockstep with the (1, E) copy issued in start().
                pltpu.make_async_copy(
                    table_hbm.at[pl.ds(0, 1), :],
                    out_ref.at[pl.ds(0, 1), :],
                    sem.at[row & (_RING - 1)],
                ).wait()

            @pl.when(tok == padding_idx)
            def _():
                # Pad token: DMA was skipped -> write the zero row directly.
                # (nn.Embedding keeps table[padding_idx] == 0.)
                out_ref[pl.ds(row, 1), :] = zero_row

        # Prologue: fill the issue window.
        for r in range(min(_LOOKAHEAD, tm)):
            start(r)

        # Steady state (unrolled): issue ahead FIRST, then retire, so the
        # descriptor path and the SMEM id reads never sit behind a .wait().
        @pl.loop(0, tm // _UNROLL)
        def _(j):
            row0 = pl.multiple_of(j * _UNROLL, _UNROLL)

            for u in range(_UNROLL):
                nxt = row0 + u + _LOOKAHEAD

                @pl.when(nxt < tm)
                def _(nxt=nxt):
                    start(nxt)

            toks = [ids_ref[base + row0 + u] for u in range(_UNROLL)]
            for u in range(_UNROLL):
                finish(row0 + u, toks[u])

    return kernel


def _make_vmem_gather_kernel(unroll):
    """Fast path: embedding table resident in VMEM -> per-row dynamic vector
    loads, zero DMA descriptors. Exact nn.Embedding row semantics (pad row is
    whatever the table holds, which nn.Embedding zeroes)."""

    def kernel(ids_ref, table_ref, out_ref):
        tm, E = out_ref.shape
        V = table_ref.shape[0]
        base = pl.program_id(0) * tm

        @pl.loop(0, tm // unroll)
        def _(j):
            row0 = pl.multiple_of(j * unroll, unroll)
            # Scalar-path id reads up front, then the gathered vector stores.
            toks = [jnp.clip(ids_ref[base + row0 + u], 0, V - 1)
                    for u in range(unroll)]
            for u in range(unroll):
                out_ref[pl.ds(row0 + u, 1), :] = table_ref[pl.ds(toks[u], 1), :]

    return kernel


def _vmem_capacity_bytes():
    try:
        info = pltpu.get_tpu_info()
        cap = getattr(info, "vmem_capacity_bytes", None)
        if cap:
            return int(cap)
    except Exception:
        pass
    return 64 << 20  # conservative default (v7x per-TensorCore VMEM)


def embedding_forward(ids, emb_table, padding_idx=0, tm=512, force_hbm_table=False):
    """Pallas equivalent of m2m_text Embedding.forward (eval-mode dropout)."""
    B, S = ids.shape
    V, E = emb_table.shape
    N = B * S
    itemsize = jnp.dtype(emb_table.dtype).itemsize

    # Token tile: sublane-aligned; capped so there are >= 2 grid tiles when
    # possible (v7x has 2 TensorCores; a 1-step grid leaves one idle).
    tm = max(8, min(tm, N))
    if N >= 16:
        tm = min(tm, max(8, ((N // 2) // 8) * 8))
    tm -= tm % 8
    n_tiles = pl.cdiv(N, tm)
    n_pad = n_tiles * tm

    # Tail tile padded with padding_idx (those rows are sliced off below).
    ids_flat = jnp.pad(ids.reshape(N).astype(jnp.int32), (0, n_pad - N),
                       constant_values=padding_idx)

    table_bytes = V * E * itemsize
    out_buf_bytes = 2 * tm * E * itemsize               # double-buffered output tile
    vmem_cap = _vmem_capacity_bytes()
    # VMEM-resident-table fast path when (double-buffered) table + output tiles
    # fit in ~half of VMEM: ~32 MiB on v7x (64 MiB), ~64 MiB on v5e/v6e (128 MiB).
    use_vmem_table = (not force_hbm_table) and (
        2 * table_bytes + out_buf_bytes <= vmem_cap // 2)

    if use_vmem_table:
        kernel = _make_vmem_gather_kernel(unroll=8)
        table_spec = pl.BlockSpec((V, E), lambda i, ids_sref: (0, 0))  # resident
        scratch = ()
        vmem_need = 2 * table_bytes + out_buf_bytes
    else:
        kernel = _make_hbm_gather_kernel(padding_idx)
        table_spec = pl.BlockSpec(memory_space=pl.ANY)                 # stays in HBM
        scratch = (pltpu.SemaphoreType.DMA((_RING,)),)
        vmem_need = out_buf_bytes

    vmem_limit = int(min(max(2 * vmem_need + (4 << 20), 16 << 20),
                         int(vmem_cap * 0.9)))

    out_flat = pl.pallas_call(
        kernel,
        out_shape=jax.ShapeDtypeStruct((n_pad, E), emb_table.dtype),
        grid_spec=pltpu.PrefetchScalarGridSpec(
            num_scalar_prefetch=1,                      # ids -> SMEM scalar path
            grid=(n_tiles,),
            in_specs=[table_spec],
            out_specs=pl.BlockSpec((tm, E), lambda i, ids_sref: (i, 0)),
            scratch_shapes=scratch,
        ),
        compiler_params=pltpu.CompilerParams(
            dimension_semantics=("parallel",),
            vmem_limit_bytes=vmem_limit,
        ),
        cost_estimate=pl.CostEstimate(
            flops=0, transcendentals=0,
            bytes_accessed=int(2 * N * E * itemsize + table_bytes + 4 * N)),
    )(ids_flat, emb_table)

    emb_out = out_flat[:N].reshape(B, S, E)
    # Dropout (emb_dropout=0.2) is identity in eval mode.
    masks = ids != padding_idx
    lengths = masks.sum(axis=-1).astype(jnp.int32)
    return emb_out, lengths, masks


def init_embedding_table(key, vocab_size, emb_size, padding_idx=0):
    # Mimic nn.Embedding default N(0, 1) init with the padding_idx row zeroed.
    w = jax.random.normal(key, (vocab_size, emb_size), dtype=jnp.float32)
    w = w.at[padding_idx].set(0.0)
    return w


if __name__ == "__main__":
    B, S = 2, 64          # batch, sequence length  -> N = 128 tokens
    V, E = 200, 128       # vocab_size, emb_size
    PAD = 0

    key = jax.random.PRNGKey(0)
    k_w, k_ids = jax.random.split(key)

    emb_table = init_embedding_table(k_w, V, E, padding_idx=PAD)

    # Token ids with some padding at the tail of each sequence.
    ids = jax.random.randint(k_ids, (B, S), minval=1, maxval=V, dtype=jnp.int32)
    ids = ids.at[0, 48:].set(PAD)
    ids = ids.at[1, 30:].set(PAD)

    ref = jnp.take(emb_table, ids, axis=0)

    # 1) Auto path (tiny table -> VMEM-resident fast path, 2 grid tiles).
    emb_out, lengths, masks = embedding_forward(ids, emb_table, padding_idx=PAD)
    jax.block_until_ready((emb_out, lengths, masks))
    assert emb_out.shape == (B, S, E)
    assert jnp.allclose(emb_out, ref), "embedding mismatch (VMEM path)"
    assert jnp.array_equal(lengths, jnp.array([48, 30], dtype=jnp.int32))
    assert jnp.array_equal(masks, ids != PAD)

    # 2) Forced HBM path (manual DMA gather ring, direct-to-output, pad-skip).
    #    tm=32 only so the small demo exercises a multi-step grid.
    emb_out2, lengths2, masks2 = embedding_forward(
        ids, emb_table, padding_idx=PAD, tm=32, force_hbm_table=True)
    jax.block_until_ready(emb_out2)
    assert jnp.allclose(emb_out2, ref), "embedding mismatch (HBM DMA path)"
    assert jnp.array_equal(lengths2, lengths)
    assert jnp.array_equal(masks2, masks)

    print("KERNEL_OK")
</pallas_src>

<mosaic_0001>
module attributes {stable_mosaic.version = 11 : i64} {
  func.func @kernel(%arg0: i32, %arg1: memref<128xi32, #tpu.memory_space<smem>>, %arg2: memref<200x128xf32, #tpu.memory_space<vmem>>, %arg3: memref<64x128xf32, #tpu.memory_space<vmem>>) attributes {dimension_semantics = [#tpu.dimension_semantics<parallel>], iteration_bounds = array<i64: 2>, scalar_prefetch = 1 : i64, scratch_operands = 0 : i64, tpu.core_type = #tpu.core_type<tc>, window_params = [{pipeline_mode = #tpu.pipeline_mode<synchronous>, transform_indices = @transform_0, window_bounds = array<i64: 200, 128>}, {transform_indices = @transform_1, window_bounds = array<i64: 64, 128>}]} {
    %c64_i32 = arith.constant 64 : i32
    %0 = arith.muli %arg0, %c64_i32 : i32
    %c0_i32 = arith.constant 0 : i32
    %c8_i32 = arith.constant 8 : i32
    %1 = arith.addi %c0_i32, %c8_i32 : i32
    %c1_i32 = arith.constant 1 : i32
    scf.for %arg4 = %c0_i32 to %1 step %c1_i32  : i32 {
      %c1_i32_1 = arith.constant 1 : i32
      %2 = arith.muli %arg4, %c1_i32_1 : i32
      %c0_i32_2 = arith.constant 0 : i32
      %3 = arith.addi %c0_i32_2, %2 : i32
      %c8_i32_3 = arith.constant 8 : i32
      %4 = arith.muli %3, %c8_i32_3 : i32
      %5 = tpu.assume_multiple %4, 8 : i32
      %6 = arith.addi %0, %5 : i32
      %c0_i32_4 = arith.constant 0 : i32
      %7 = arith.addi %6, %c0_i32_4 : i32
      %8 = arith.index_cast %7 : i32 to index
      %9 = memref.load %arg1[%8] : memref<128xi32, #tpu.memory_space<smem>>
      %c0_i32_5 = arith.constant 0 : i32
      %c199_i32 = arith.constant 199 : i32
      %10 = arith.maxsi %c0_i32_5, %9 : i32
      %11 = arith.minsi %c199_i32, %10 : i32
      %12 = arith.addi %0, %5 : i32
      %c1_i32_6 = arith.constant 1 : i32
      %13 = arith.addi %12, %c1_i32_6 : i32
      %14 = arith.index_cast %13 : i32 to index
      %15 = memref.load %arg1[%14] : memref<128xi32, #tpu.memory_space<smem>>
      %c0_i32_7 = arith.constant 0 : i32
      %c199_i32_8 = arith.constant 199 : i32
      %16 = arith.maxsi %c0_i32_7, %15 : i32
      %17 = arith.minsi %c199_i32_8, %16 : i32
      %18 = arith.addi %0, %5 : i32
      %c2_i32 = arith.constant 2 : i32
      %19 = arith.addi %18, %c2_i32 : i32
      %20 = arith.index_cast %19 : i32 to index
      %21 = memref.load %arg1[%20] : memref<128xi32, #tpu.memory_space<smem>>
      %c0_i32_9 = arith.constant 0 : i32
      %c199_i32_10 = arith.constant 199 : i32
      %22 = arith.maxsi %c0_i32_9, %21 : i32
      %23 = arith.minsi %c199_i32_10, %22 : i32
      %24 = arith.addi %0, %5 : i32
      %c3_i32 = arith.constant 3 : i32
      %25 = arith.addi %24, %c3_i32 : i32
      %26 = arith.index_cast %25 : i32 to index
      %27 = memref.load %arg1[%26] : memref<128xi32, #tpu.memory_space<smem>>
      %c0_i32_11 = arith.constant 0 : i32
      %c199_i32_12 = arith.constant 199 : i32
      %28 = arith.maxsi %c0_i32_11, %27 : i32
      %29 = arith.minsi %c199_i32_12, %28 : i32
      %30 = arith.addi %0, %5 : i32
      %c4_i32 = arith.constant 4 : i32
      %31 = arith.addi %30, %c4_i32 : i32
      %32 = arith.index_cast %31 : i32 to index
      %33 = memref.load %arg1[%32] : memref<128xi32, #tpu.memory_space<smem>>
      %c0_i32_13 = arith.constant 0 : i32
      %c199_i32_14 = arith.constant 199 : i32
      %34 = arith.maxsi %c0_i32_13, %33 : i32
      %35 = arith.minsi %c199_i32_14, %34 : i32
      %36 = arith.addi %0, %5 : i32
      %c5_i32 = arith.constant 5 : i32
      %37 = arith.addi %36, %c5_i32 : i32
      %38 = arith.index_cast %37 : i32 to index
      %39 = memref.load %arg1[%38] : memref<128xi32, #tpu.memory_space<smem>>
      %c0_i32_15 = arith.constant 0 : i32
      %c199_i32_16 = arith.constant 199 : i32
      %40 = arith.maxsi %c0_i32_15, %39 : i32
      %41 = arith.minsi %c199_i32_16, %40 : i32
      %42 = arith.addi %0, %5 : i32
      %c6_i32 = arith.constant 6 : i32
      %43 = arith.addi %42, %c6_i32 : i32
      %44 = arith.index_cast %43 : i32 to index
      %45 = memref.load %arg1[%44] : memref<128xi32, #tpu.memory_space<smem>>
      %c0_i32_17 = arith.constant 0 : i32
      %c199_i32_18 = arith.constant 199 : i32
      %46 = arith.maxsi %c0_i32_17, %45 : i32
      %47 = arith.minsi %c199_i32_18, %46 : i32
      %48 = arith.addi %0, %5 : i32
      %c7_i32 = arith.constant 7 : i32
      %49 = arith.addi %48, %c7_i32 : i32
      %50 = arith.index_cast %49 : i32 to index
      %51 = memref.load %arg1[%50] : memref<128xi32, #tpu.memory_space<smem>>
      %c0_i32_19 = arith.constant 0 : i32
      %c199_i32_20 = arith.constant 199 : i32
      %52 = arith.maxsi %c0_i32_19, %51 : i32
      %53 = arith.minsi %c199_i32_20, %52 : i32
      %54 = arith.index_cast %11 : i32 to index
      %c0 = arith.constant 0 : index
      %55 = vector.load %arg2[%54, %c0] : memref<200x128xf32, #tpu.memory_space<vmem>>, vector<1x128xf32>
      %c0_i32_21 = arith.constant 0 : i32
      %56 = arith.addi %5, %c0_i32_21 : i32
      %57 = arith.index_cast %56 : i32 to index
      %c0_22 = arith.constant 0 : index
      %58 = vector.load %arg3[%57, %c0_22] : memref<64x128xf32, #tpu.memory_space<vmem>>, vector<1x128xf32>
      tpu.vector_store %arg3[%57, %c0_22], %55 {strides = array<i32>} : memref<64x128xf32, #tpu.memory_space<vmem>>, vector<1x128xf32>,
      %59 = arith.index_cast %17 : i32 to index
      %c0_23 = arith.constant 0 : index
      %60 = vector.load %arg2[%59, %c0_23] : memref<200x128xf32, #tpu.memory_space<vmem>>, vector<1x128xf32>
      %c1_i32_24 = arith.constant 1 : i32
      %61 = arith.addi %5, %c1_i32_24 : i32
      %62 = arith.index_cast %61 : i32 to index
      %c0_25 = arith.constant 0 : index
      %63 = vector.load %arg3[%62, %c0_25] : memref<64x128xf32, #tpu.memory_space<vmem>>, vector<1x128xf32>
      tpu.vector_store %arg3[%62, %c0_25], %60 {strides = array<i32>} : memref<64x128xf32, #tpu.memory_space<vmem>>, vector<1x128xf32>,
      %64 = arith.index_cast %23 : i32 to index
      %c0_26 = arith.constant 0 : index
      %65 = vector.load %arg2[%64, %c0_26] : memref<200x128xf32, #tpu.memory_space<vmem>>, vector<1x128xf32>
      %c2_i32_27 = arith.constant 2 : i32
      %66 = arith.addi %5, %c2_i32_27 : i32
      %67 = arith.index_cast %66 : i32 to index
      %c0_28 = arith.constant 0 : index
      %68 = vector.load %arg3[%67, %c0_28] : memref<64x128xf32, #tpu.memory_space<vmem>>, vector<1x128xf32>
      tpu.vector_store %arg3[%67, %c0_28], %65 {strides = array<i32>} : memref<64x128xf32, #tpu.memory_space<vmem>>, vector<1x128xf32>,
      %69 = arith.index_cast %29 : i32 to index
      %c0_29 = arith.constant 0 : index
      %70 = vector.load %arg2[%69, %c0_29] : memref<200x128xf32, #tpu.memory_space<vmem>>, vector<1x128xf32>
      %c3_i32_30 = arith.constant 3 : i32
      %71 = arith.addi %5, %c3_i32_30 : i32
      %72 = arith.index_cast %71 : i32 to index
      %c0_31 = arith.constant 0 : index
      %73 = vector.load %arg3[%72, %c0_31] : memref<64x128xf32, #tpu.memory_space<vmem>>, vector<1x128xf32>
      tpu.vector_store %arg3[%72, %c0_31], %70 {strides = array<i32>} : memref<64x128xf32, #tpu.memory_space<vmem>>, vector<1x128xf32>,
      %74 = arith.index_cast %35 : i32 to index
      %c0_32 = arith.constant 0 : index
      %75 = vector.load %arg2[%74, %c0_32] : memref<200x128xf32, #tpu.memory_space<vmem>>, vector<1x128xf32>
      %c4_i32_33 = arith.constant 4 : i32
      %76 = arith.addi %5, %c4_i32_33 : i32
      %77 = arith.index_cast %76 : i32 to index
      %c0_34 = arith.constant 0 : index
      %78 = vector.load %arg3[%77, %c0_34] : memref<64x128xf32, #tpu.memory_space<vmem>>, vector<1x128xf32>
      tpu.vector_store %arg3[%77, %c0_34], %75 {strides = array<i32>} : memref<64x128xf32, #tpu.memory_space<vmem>>, vector<1x128xf32>,
      %79 = arith.index_cast %41 : i32 to index
      %c0_35 = arith.constant 0 : index
      %80 = vector.load %arg2[%79, %c0_35] : memref<200x128xf32, #tpu.memory_space<vmem>>, vector<1x128xf32>
      %c5_i32_36 = arith.constant 5 : i32
      %81 = arith.addi %5, %c5_i32_36 : i32
      %82 = arith.index_cast %81 : i32 to index
      %c0_37 = arith.constant 0 : index
      %83 = vector.load %arg3[%82, %c0_37] : memref<64x128xf32, #tpu.memory_space<vmem>>, vector<1x128xf32>
      tpu.vector_store %arg3[%82, %c0_37], %80 {strides = array<i32>} : memref<64x128xf32, #tpu.memory_space<vmem>>, vector<1x128xf32>,
      %84 = arith.index_cast %47 : i32 to index
      %c0_38 = arith.constant 0 : index
      %85 = vector.load %arg2[%84, %c0_38] : memref<200x128xf32, #tpu.memory_space<vmem>>, vector<1x128xf32>
      %c6_i32_39 = arith.constant 6 : i32
      %86 = arith.addi %5, %c6_i32_39 : i32
      %87 = arith.index_cast %86 : i32 to index
      %c0_40 = arith.constant 0 : index
      %88 = vector.load %arg3[%87, %c0_40] : memref<64x128xf32, #tpu.memory_space<vmem>>, vector<1x128xf32>
      tpu.vector_store %arg3[%87, %c0_40], %85 {strides = array<i32>} : memref<64x128xf32, #tpu.memory_space<vmem>>, vector<1x128xf32>,
      %89 = arith.index_cast %53 : i32 to index
      %c0_41 = arith.constant 0 : index
      %90 = vector.load %arg2[%89, %c0_41] : memref<200x128xf32, #tpu.memory_space<vmem>>, vector<1x128xf32>
      %c7_i32_42 = arith.constant 7 : i32
      %91 = arith.addi %5, %c7_i32_42 : i32
      %92 = arith.index_cast %91 : i32 to index
      %c0_43 = arith.constant 0 : index
      %93 = vector.load %arg3[%92, %c0_43] : memref<64x128xf32, #tpu.memory_space<vmem>>, vector<1x128xf32>
      tpu.vector_store %arg3[%92, %c0_43], %90 {strides = array<i32>} : memref<64x128xf32, #tpu.memory_space<vmem>>, vector<1x128xf32>,
    }
    %c8_i32_0 = arith.constant 8 : i32
    return
  }
  func.func @transform_0(%arg0: i32, %arg1: memref<128xi32, #tpu.memory_space<smem>>) -> (i32, i32) {
    %c0_i32 = arith.constant 0 : i32
    %c0_i32_0 = arith.constant 0 : i32
    %c0_i32_1 = arith.constant 0 : i32
    return %c0_i32, %c0_i32_0 : i32, i32
  }
  func.func @transform_1(%arg0: i32, %arg1: memref<128xi32, #tpu.memory_space<smem>>) -> (i32, i32) {
    %c0_i32 = arith.constant 0 : i32
    %c0_i32_0 = arith.constant 0 : i32
    return %arg0, %c0_i32 : i32, i32
  }
}

</mosaic_0001>

<llo_original>
// kernel: tpu_custom_call.1
$region0: #{tpu_custom_call.1}
  #allocation0 [shape = 'u32[]', space=smem, size = 0x4, offset = 0x4, fixed_abs, tag = 'smem constant byte address 0x4 - core index']
  #allocation1 [shape = 'u32[144,128]{1,0:T(1,128)}', space=vmem, size = 0x12000, scoped, tag = 'internal scratch']
  #allocation2 [shape = 's32[1]{0}', space=sflag, size = 0x4, scoped, tag = 'scoped memory for tpu_custom_call.1']
  #allocation3 [shape = 'u8[512]{0}', space=smem, size = 0x200, scoped, tag = 'prefetched SMEM operand 0']
  %s0 = inlined_call_operand.hbm [shape: s32[128], index: 0, kind: input, shape index: {}]
  %s1 = inlined_call_operand.hbm [shape: f32[200,128], index: 1, kind: input, shape index: {}]
  %s2 = inlined_call_operand.hbm [shape: f32[128,128], index: 2, kind: output, shape index: {}]
  %s3 = sld [smem:[#allocation0]]
  $region48: #{tpu_custom_call.1} parent=0
    _
  %s5 = ssub.s32 1, %s3
  %s6 = scalar_select 0, %s5, %s3
  %8 = dma.hbm_to_smem %s0, 16, [#allocation3], [#allocation2]
  %9 = dma.done [#allocation2], 16
  %10 = sfence
  $region1: #{tpu_custom_call.1} parent=0
    #allocation4 [shape = 'u8[102400]{0}', space=vmem, size = 0x19000, scoped, tag = 'input window, operand 1, single buffered']
    #allocation5 [shape = 's32[2]{0}', space=sflag, size = 0x8, scoped, tag = 'scoped memory for tpu_custom_call.1']
    #allocation6 [shape = 's32[2]{0}', space=sflag, size = 0x8, scoped, tag = 'scoped memory for tpu_custom_call.1']
    #allocation7 [shape = 'u8[65536]{0}', space=vmem, size = 0x10000, scoped, tag = 'output window, operand 0']
    %11 = vsyncpa [#allocation5], 0
    %12 = vsyncpa [#allocation6], 0
    %s13 = scalar_lea.sflag [#allocation6], 1
    %14 = vsyncpa %s13, 0
    loop: start=0, step=1, limit=4
    $region2: #{tpu_custom_call.1} parent=1 // loop_pre_header
      _
    $region3: #{tpu_custom_call.1} parent=1 // loop_header
      %s16 = sphi 0, %s20
      %p17 = scmp.ge.s32.totalorder %s16, 4
      %s24 = sphi 0, %s24
      %s26 = sphi 0, %s24
      %s27 = sphi 0, %s26
      %s41 = sphi 0, %s27
      %s47 = sphi 0, %s49
      %s50 = sphi 0, %s47
      %s51 = sphi 0, %s50
      %s67 = sphi 0, %s51
    $region4: #{tpu_custom_call.1} parent=1 // loop_header_branch
      %19 = sbr.rel (%p17) target = $region8
    $region5: #{tpu_custom_call.1} parent=1 // loop_body
      %s21 = ssub.s32 %s16, 1
      %s22 = ssub.s32 %s16, 2
      %s23 = sadd.s32 %s16, 1
      %s25 = sadd.s32 %s24, 1
      %p28 = scmp.eq.s32.totalorder %s16, 1
      %p29 = scmp.ne.s32.totalorder %s24, %s26
      %p30 = scmp.eq.s32.totalorder %s16, 0
      %p31 = por %p29, %p30
      %p32 = scmp.ne.s32.totalorder %s24, %s26
      %p33 = scmp.eq.s32.totalorder %s21, 1
      %p34 = por %p32, %p33
      %p35 = scmp.ne.s32.totalorder %s26, %s27
      %p36 = scmp.eq.s32.totalorder %s21, 0
      %p37 = por %p35, %p36
      %p38 = scmp.ne.s32.totalorder %s26, %s27
      %p39 = scmp.eq.s32.totalorder %s22, 1
      %p40 = por %p38, %p39
      %p42 = scmp.ne.s32.totalorder %s27, %s41
      %p43 = scmp.eq.s32.totalorder %s22, 0
      %p44 = por %p42, %p43
      %s45 = ssub.s32 %s16, %s23
      %p46 = scmp.eq.s32.totalorder %s45, 0
      %s48 = sadd.s32 %s47, 1
      %s49 = scalar_select %p46, %s47, %s48
      %p52 = pneg %p46
      %p53 = scmp.eq.s32.totalorder %s16, 1
      %p54 = por %p52, %p53
      %p55 = scmp.ne.s32.totalorder %s47, %s50
      %p56 = scmp.eq.s32.totalorder %s16, 0
      %p57 = por %p55, %p56
      %p58 = scmp.ne.s32.totalorder %s47, %s50
      %p59 = scmp.eq.s32.totalorder %s21, 1
      %p60 = por %p58, %p59
      %p61 = scmp.ne.s32.totalorder %s50, %s51
      %p62 = scmp.eq.s32.totalorder %s21, 0
      %p63 = por %p61, %p62
      %p64 = scmp.ne.s32.totalorder %s50, %s51
      %p65 = scmp.eq.s32.totalorder %s22, 1
      %p66 = por %p64, %p65
      %p68 = scmp.ne.s32.totalorder %s51, %s67
      %p69 = scmp.eq.s32.totalorder %s22, 0
      %p70 = por %p68, %p69
      %p71 = scmp.le.s32.totalorder 1, %s16
      %p72 = scmp.lt.s32.totalorder %s16, 3
      %p73 = pnand %p71, %p72
      %p74 = pneg %p73
      // Predicated region
      $region9: #{tpu_custom_call.1} parent=5 // pred_check
        _
      $region10: #{tpu_custom_call.1} parent=5 // pred_check_branch
        %76 = sbr.rel (%p73) target = $region12
      $region11: #{tpu_custom_call.1} parent=5 // pred_region
        %s77 = ssub.s32 %s16, 1
        // Predicated region
        $region13: #{tpu_custom_call.1} parent=11 // pred_check
          %p78 = pneg %p37
        $region14: #{tpu_custom_call.1} parent=11 // pred_check_branch
          %80 = sbr.rel (%p78) target = $region16
        $region15: #{tpu_custom_call.1} parent=11 // pred_region
          %s82 = ssub.s32 3200, 3200
          %83 = vsyncadd [#allocation5], %s82
          %s84 = sshll.u32 [#allocation4], 4
          %s85 = int_to_ptr.vmem [resolvable:$true] %s84
          %90 = dma.hbm_to_vmem [thread:$0]  %s1, 3200, %s85, [#allocation5], 128, 128, 8
        $region16: #{tpu_custom_call.1} parent=11 // pred_fallthru
          _
      $region12: #{tpu_custom_call.1} parent=5 // pred_fallthru
        _
      %p91 = scmp.lt.s32.totalorder %s16, 2
      // Predicated region
      $region17: #{tpu_custom_call.1} parent=5 // pred_check
        %p92 = pneg %p91
      $region18: #{tpu_custom_call.1} parent=5 // pred_check_branch
        %94 = sbr.rel (%p92) target = $region20
      $region19: #{tpu_custom_call.1} parent=5 // pred_region
        _
      $region20: #{tpu_custom_call.1} parent=5 // pred_fallthru
        _
      %p95 = scmp.le.s32.totalorder 1, %s16
      %p96 = scmp.lt.s32.totalorder %s16, 3
      %p97 = pnand %p95, %p96
      %p98 = pneg %p97
      // Predicated region
      $region21: #{tpu_custom_call.1} parent=5 // pred_check
        _
      $region22: #{tpu_custom_call.1} parent=5 // pred_check_branch
        %100 = sbr.rel (%p97) target = $region24
      $region23: #{tpu_custom_call.1} parent=5 // pred_region
        %s101 = ssub.s32 %s16, 1
        // Predicated region
        $region25: #{tpu_custom_call.1} parent=23 // pred_check
          %p102 = pneg %p37
        $region26: #{tpu_custom_call.1} parent=23 // pred_check_branch
          %104 = sbr.rel (%p102) target = $region28
        $region27: #{tpu_custom_call.1} parent=23 // pred_region
          %105 = dma.done [#allocation5], 3200
        $region28: #{tpu_custom_call.1} parent=23 // pred_fallthru
          _
        %p106 = pneg %p37
        %p107 = pneg %p34
        %p108 = pneg %p63
        %p109 = pneg %p60
        %s110 = sand.u32 %s50, 1
        %s111 = scalar_lea.sflag [#allocation6], %s110
        %s112 = sand.u32 %s50, 1
        %s113 = smul.addr %s112, 64
        %s114 = scalar_lea.vmem [#allocation7], %s113
        %s115 = smul.u32 8, %s21
        %s116 = smul.u32 %s21, 64
        loop: start=0, step=1, limit=8
        $region29: #{tpu_custom_call.1} parent=23 // loop_pre_header
          _
        $region30: #{tpu_custom_call.1} parent=23 // loop_header
          %s118 = sphi 0, %s122
          %p119 = scmp.ge.s32.totalorder %s118, 8
        $region31: #{tpu_custom_call.1} parent=23 // loop_header_branch
          %121 = sbr.rel (%p119) target = $region35
        $region32: #{tpu_custom_call.1} parent=23 // loop_body
          %s123 = smul.u32 %s118, 8
          %s124 = sadd.s32 %s116, %s123
          %s125 = sld [smem:[#allocation3 + %s124]]
          %p126 = scmp.gt.s32.totalorder %s125, 0
          %s127 = scalar_select %p126, %s125, 0
          %p128 = scmp.lt.s32.totalorder %s127, 199
          %s129 = scalar_select %p128, %s127, 199
          %s130 = sadd.s32 %s124, 1
          %s131 = sld [smem:[#allocation3 + %s130]]
          %p132 = scmp.gt.s32.totalorder %s131, 0
          %s133 = scalar_select %p132, %s131, 0
          %p134 = scmp.lt.s32.totalorder %s133, 199
          %s135 = scalar_select %p134, %s133, 199
          %s136 = sadd.s32 %s124, 2
          %s137 = sld [smem:[#allocation3 + %s136]]
          %p138 = scmp.gt.s32.totalorder %s137, 0
          %s139 = scalar_select %p138, %s137, 0
          %p140 = scmp.lt.s32.totalorder %s139, 199
          %s141 = scalar_select %p140, %s139, 199
          %s142 = sadd.s32 %s124, 3
          %s143 = sld [smem:[#allocation3 + %s142]]
          %p144 = scmp.gt.s32.totalorder %s143, 0
          %s145 = scalar_select %p144, %s143, 0
          %p146 = scmp.lt.s32.totalorder %s145, 199
          %s147 = scalar_select %p146, %s145, 199
          %s148 = sadd.s32 %s124, 4
          %s149 = sld [smem:[#allocation3 + %s148]]
          %p150 = scmp.gt.s32.totalorder %s149, 0
          %s151 = scalar_select %p150, %s149, 0
          %p152 = scmp.lt.s32.totalorder %s151, 199
          %s153 = scalar_select %p152, %s151, 199
          %s154 = sadd.s32 %s124, 5
          %s155 = sld [smem:[#allocation3 + %s154]]
          %p156 = scmp.gt.s32.totalorder %s155, 0
          %s157 = scalar_select %p156, %s155, 0
          %p158 = scmp.lt.s32.totalorder %s157, 199
          %s159 = scalar_select %p158, %s157, 199
          %s160 = sadd.s32 %s124, 6
          %s161 = sld [smem:[#allocation3 + %s160]]
          %p162 = scmp.gt.s32.totalorder %s161, 0
          %s163 = scalar_select %p162, %s161, 0
          %p164 = scmp.lt.s32.totalorder %s163, 199
          %s165 = scalar_select %p164, %s163, 199
          %s166 = sadd.s32 %s124, 7
          %s167 = sld [smem:[#allocation3 + %s166]]
          %p168 = scmp.gt.s32.totalorder %s167, 0
          %s169 = scalar_select %p168, %s167, 0
          %p170 = scmp.lt.s32.totalorder %s169, 199
          %s171 = scalar_select %p170, %s169, 199
          %s172 = scalar_lea.vmem [#allocation4], %s129
          %v173 = vld [vmem:[%s172] sm:$0x1]
          %s174 = scalar_lea.vmem %s114, %s123 [#allocation7]
          %175 = vst [vmem:[%s174] sm:$0x1] %v173
          %s176 = scalar_lea.vmem [#allocation4], %s135
          %v177 = vld [vmem:[%s176] sm:$0x1]
          %s178 = sadd.s32 %s123, 1
          %s179 = scalar_lea.vmem %s114, %s178 [#allocation7]
          %180 = vst [vmem:[%s179] sm:$0x1] %v177
          %s181 = scalar_lea.vmem [#allocation4], %s141
          %v182 = vld [vmem:[%s181] sm:$0x1]
          %s183 = sadd.s32 %s123, 2
          %s184 = scalar_lea.vmem %s114, %s183 [#allocation7]
          %185 = vst [vmem:[%s184] sm:$0x1] %v182
          %s186 = scalar_lea.vmem [#allocation4], %s147
          %v187 = vld [vmem:[%s186] sm:$0x1]
          %s188 = sadd.s32 %s123, 3
          %s189 = scalar_lea.vmem %s114, %s188 [#allocation7]
          %190 = vst [vmem:[%s189] sm:$0x1] %v187
          %s191 = scalar_lea.vmem [#allocation4], %s153
          %v192 = vld [vmem:[%s191] sm:$0x1]
          %s193 = sadd.s32 %s123, 4
          %s194 = scalar_lea.vmem %s114, %s193 [#allocation7]
          %195 = vst [vmem:[%s194] sm:$0x1] %v192
          %s196 = scalar_lea.vmem [#allocation4], %s159
          %v197 = vld [vmem:[%s196] sm:$0x1]
          %s198 = sadd.s32 %s123, 5
          %s199 = scalar_lea.vmem %s114, %s198 [#allocation7]
          %200 = vst [vmem:[%s199] sm:$0x1] %v197
          %s201 = scalar_lea.vmem [#allocation4], %s165
          %v202 = vld [vmem:[%s201] sm:$0x1]
          %s203 = sadd.s32 %s123, 6
          %s204 = scalar_lea.vmem %s114, %s203 [#allocation7]
          %205 = vst [vmem:[%s204] sm:$0x1] %v202
          %s206 = scalar_lea.vmem [#allocation4], %s171
          %v207 = vld [vmem:[%s206] sm:$0x1]
          %s208 = sadd.s32 %s123, 7
          %s209 = scalar_lea.vmem %s114, %s208 [#allocation7]
          %210 = vst [vmem:[%s209] sm:$0x1] %v207
        $region33: #{tpu_custom_call.1} parent=23 // loop_footer
          %s122 = sadd.s32 1, %s118
        $region34: #{tpu_custom_call.1} parent=23 // loop_footer_branch
          %117 = sbr.rel target = $region30
        $region35: #{tpu_custom_call.1} parent=23 // loop_exit
          _
        %s211 = sand.u32 %s50, 1
        %s212 = scalar_lea.sflag [#allocation6], %s211
        %s213 = sand.u32 %s50, 1
        %s214 = smul.addr %s213, 64
        %s215 = scalar_lea.vmem [#allocation7], %s214
        // Predicated region
        $region36: #{tpu_custom_call.1} parent=23 // pred_check
          %p216 = pneg %p60
        $region37: #{tpu_custom_call.1} parent=23 // pred_check_branch
          %218 = sbr.rel (%p216) target = $region39
        $region38: #{tpu_custom_call.1} parent=23 // pred_region
          %s219 = smul.u32 8, %s21
          %s221 = ssub.s32 1024, 1024
          %222 = vsyncadd %s212, %s221
          %s223 = smul.addr %s219, 128
          %s224 = scalar_lea.hbm %s2, %s223
          %s225 = sshll.u32 %s215, 4
          %s226 = int_to_ptr.vmem [resolvable:$true] %s225
          %231 = dma.vmem_to_hbm [thread:$0]  %s226, 1024, %s224, %s212, 128, 128, 8
        $region39: #{tpu_custom_call.1} parent=23 // pred_fallthru
          _
      $region24: #{tpu_custom_call.1} parent=5 // pred_fallthru
        _
      %p232 = scmp.le.s32.totalorder 2, %s16
      // Predicated region
      $region40: #{tpu_custom_call.1} parent=5 // pred_check
        %p233 = pneg %p232
      $region41: #{tpu_custom_call.1} parent=5 // pred_check_branch
        %235 = sbr.rel (%p233) target = $region43
      $region42: #{tpu_custom_call.1} parent=5 // pred_region
        %s236 = ssub.s32 %s16, 2
        // Predicated region
        $region44: #{tpu_custom_call.1} parent=42 // pred_check
          %p237 = pneg %p66
        $region45: #{tpu_custom_call.1} parent=42 // pred_check_branch
          %239 = sbr.rel (%p237) target = $region47
        $region46: #{tpu_custom_call.1} parent=42 // pred_region
          %s240 = sand.u32 %s51, 1
          %s241 = scalar_lea.sflag [#allocation6], %s240
          %s242 = sand.u32 %s51, 1
          %s243 = smul.addr %s242, 64
          %s244 = scalar_lea.vmem [#allocation7], %s243
          %245 = dma.done %s241, 1024
        $region47: #{tpu_custom_call.1} parent=42 // pred_fallthru
          _
      $region43: #{tpu_custom_call.1} parent=5 // pred_fallthru
        _
    $region6: #{tpu_custom_call.1} parent=1 // loop_footer
      %s20 = sadd.s32 1, %s16
    $region7: #{tpu_custom_call.1} parent=1 // loop_footer_branch
      %15 = sbr.rel target = $region3
    $region8: #{tpu_custom_call.1} parent=1 // loop_exit
      _
    %246 = vsyncpa [#allocation5], 1
    %s247 = scalar_lea.sflag [#allocation5], 1
    %248 = vsyncpa %s247, 1
    %249 = vsyncpa [#allocation6], 1
    %s250 = scalar_lea.sflag [#allocation6], 1
    %251 = vsyncpa %s250, 1

</llo_original>
